<compile_context>
chip_gen: v6e
topology: v6e:2x2x1
jax: 0.10.0
libtpu: 0.0.40
codegen_flags: <defaults>
</compile_context>

<pallas_src>
import functools

import jax
import jax.numpy as jnp
from jax.experimental import pallas as pl
from jax.experimental.pallas import tpu as pltpu

_IGNORE_INDEX = -100
_NEG_BIG = -1e30   # finite "-inf": exp(_NEG_BIG - m) underflows to exactly 0.


def _lse_kernel(feat_ref, lse_ref, m_sc, l_sc, *, c, tile_c):
    """Online log-sum-exp over the class axis for one batch tile."""
    ci = pl.program_id(1)            # class-tile index (reduction, "arbitrary")

    @pl.when(ci == 0)
    def _init():
        m_sc[...] = jnp.full(m_sc.shape, _NEG_BIG, dtype=jnp.float32)
        l_sc[...] = jnp.zeros(l_sc.shape, dtype=jnp.float32)

    x = feat_ref[...]                # native dtype (bf16 stays bf16 on the VPU)

    if c % tile_c != 0:
        # Only compiled when C is not a multiple of tile_c (_choose_tiles
        # prefers divisors, so this is rare).  Mask the padded garbage columns
        # of the last class tile; earlier tiles see n_valid == tile_c, so the
        # select is a no-op there (scalar-broadcast compare, no int32 tile).
        local_col = jax.lax.broadcasted_iota(jnp.int32, x.shape, 1)
        n_valid = jnp.minimum(c - ci * tile_c, tile_c)
        x = jnp.where(local_col < n_valid, x, _NEG_BIG)

    # Max in the input dtype (2x VPU width for bf16 on v6e/v7x); the f32
    # upcast is fused into the exp input instead of materializing an f32 tile.
    tile_max = jnp.max(x, axis=-1, keepdims=True).astype(jnp.float32)
    m_prev = m_sc[...]
    m_new = jnp.maximum(m_prev, tile_max)
    alpha = jnp.exp(m_prev - m_new)
    p = jnp.exp(x.astype(jnp.float32) - m_new)
    l_sc[...] = alpha * l_sc[...] + jnp.sum(p, axis=-1, keepdims=True)
    m_sc[...] = m_new

    @pl.when(ci == pl.num_programs(1) - 1)
    def _finalize():
        lse_ref[...] = m_sc[...] + jnp.log(l_sc[...])


def _round_up(x, m):
    return ((x + m - 1) // m) * m


def _choose_tiles(n, c, itemsize, vmem_cap):
    small_vmem = vmem_cap <= (64 << 20)          # v7x: 64 MiB per TensorCore

    # ---- class tile: as large as the VMEM budget allows; prefer a
    #      multiple-of-128 divisor of C so no padded-column mask is compiled.
    max_tc = (8192 if itemsize <= 2 else 4096) if small_vmem else 8192
    if c <= max_tc:
        tile_c = c
    else:
        tile_c = 0
        d = max_tc - (max_tc % 128)
        while d >= 128:
            if c % d == 0:
                tile_c = d
                break
            d -= 128
        if tile_c == 0:
            tile_c = max_tc                      # fallback: mask the last tile

    # ---- batch tile: big (amortize ~0.35 us/grid-step), multiple of 16, and
    #      at least two tiles for large N so both v7x TensorCores get work.
    max_tn = 256 if small_vmem else 512
    if n <= 16:
        tile_n = n
    else:
        tile_n = min(max_tn, _round_up(pl.cdiv(n, 2), 16))
    return tile_n, tile_c


def cross_entropy_pallas(feature, label, *, tile_n=None, tile_c=None):
    """Mirrors CrossEntropy.forward: label.squeeze(0) then mean cross-entropy."""
    # glue: reproduce `batch.label.squeeze(0)`
    if label.ndim > 1 and label.shape[0] == 1:
        label = jnp.squeeze(label, axis=0)
    n, c = feature.shape
    label = label.astype(jnp.int32)

    try:
        vmem_cap = int(pltpu.get_tpu_info().vmem_capacity_bytes)
    except Exception:
        vmem_cap = 64 << 20                      # conservative (v7x) default
    auto_tn, auto_tc = _choose_tiles(n, c, feature.dtype.itemsize, vmem_cap)
    tile_n = auto_tn if tile_n is None else tile_n
    tile_c = auto_tc if tile_c is None else tile_c
    n_i = pl.cdiv(n, tile_n)
    n_c = pl.cdiv(c, tile_c)
    # Default scoped VMEM limit is only 16/32 MiB; raise it so the big tiles
    # double-buffer cleanly, leaving headroom under the physical capacity.
    vmem_limit = int(min(vmem_cap * 3 // 4, 96 << 20))

    kernel = functools.partial(_lse_kernel, c=c, tile_c=tile_c)

    lse = pl.pallas_call(
        kernel,
        out_shape=jax.ShapeDtypeStruct((n, 1), jnp.float32),
        grid_spec=pltpu.PrefetchScalarGridSpec(
            num_scalar_prefetch=0,
            grid=(n_i, n_c),
            in_specs=[pl.BlockSpec((tile_n, tile_c), lambda i, ci: (i, ci))],
            out_specs=pl.BlockSpec((tile_n, 1), lambda i, ci: (i, 0)),
            scratch_shapes=[pltpu.VMEM((tile_n, 1), jnp.float32)] * 2,
        ),
        compiler_params=pltpu.CompilerParams(
            dimension_semantics=("parallel", "arbitrary"),
            vmem_limit_bytes=vmem_limit),
        cost_estimate=pl.CostEstimate(
            flops=4 * n * c,
            transcendentals=n * c,
            bytes_accessed=n * c * feature.dtype.itemsize + n * 4),
    )(feature)

    # Target-logit gather + PyTorch 'mean' with ignore_index: touches only N
    # elements, so it stays in the wrapper (keeps ~5 VPU ops/element out of
    # the kernel's binding slot).
    valid = label != _IGNORE_INDEX
    safe_lab = jnp.clip(label, 0, c - 1)
    tgt = jnp.take_along_axis(feature, safe_lab[:, None], axis=1)
    nll = lse - tgt.astype(jnp.float32)          # (n, 1)
    nll = jnp.where(valid[:, None], nll, 0.0)
    denom = jnp.sum(valid.astype(jnp.float32))
    # NOTE: if every label is ignore_index, denom == 0 and the loss is NaN
    # (matches PyTorch).  Out-of-range labels are not range-checked (PyTorch
    # raises; here the gather index is clipped).
    loss = jnp.sum(nll) / denom
    return {"loss": loss}


if __name__ == "__main__":
    key = jax.random.PRNGKey(0)
    k_feat, k_lab, k_feat2, k_lab2 = jax.random.split(key, 4)

    # --- check 1: small shape matching the module; labels arrive as (1, N)
    #     so the module's squeeze(0) is exercised.
    N, C = 8, 32
    feature = jax.random.normal(k_feat, (N, C), dtype=jnp.float32)
    label = jax.random.randint(k_lab, (1, N), 0, C, dtype=jnp.int32)
    loss = jax.block_until_ready(cross_entropy_pallas(feature, label)["loss"])
    logp = jax.nn.log_softmax(feature, axis=-1)
    ref = -jnp.mean(logp[jnp.arange(N), jnp.squeeze(label, 0)])
    assert jnp.allclose(loss, ref, atol=1e-5, rtol=1e-5), (loss, ref)

    # --- check 2: ignore_index=-100 handling (PyTorch default).
    label_ig = label.at[0, 3].set(_IGNORE_INDEX)
    loss_ig = jax.block_until_ready(cross_entropy_pallas(feature, label_ig)["loss"])
    lab = jnp.squeeze(label_ig, 0)
    v = lab != _IGNORE_INDEX
    ref_ig = -(jnp.sum(jnp.where(v, logp[jnp.arange(N), jnp.clip(lab, 0, C - 1)], 0.0))
               / jnp.sum(v))
    assert jnp.allclose(loss_ig, ref_ig, atol=1e-5, rtol=1e-5), (loss_ig, ref_ig)

    # --- check 3: multi-tile grid with forced small tiles (partial last batch
    #     tile + non-divisible last class tile -> exercises the online-LSE
    #     carry and both padding paths).
    N2, C2 = 40, 384
    feature2 = jax.random.normal(k_feat2, (N2, C2), dtype=jnp.float32)
    label2 = jax.random.randint(k_lab2, (N2,), 0, C2, dtype=jnp.int32)
    label2 = label2.at[5].set(_IGNORE_INDEX)
    loss2 = jax.block_until_ready(
        cross_entropy_pallas(feature2, label2, tile_n=16, tile_c=256)["loss"])
    logp2 = jax.nn.log_softmax(feature2, axis=-1)
    v2 = label2 != _IGNORE_INDEX
    ref2 = -(jnp.sum(jnp.where(
        v2, logp2[jnp.arange(N2), jnp.clip(label2, 0, C2 - 1)], 0.0)) / jnp.sum(v2))
    assert jnp.allclose(loss2, ref2, atol=1e-5, rtol=1e-5), (loss2, ref2)

    print("KERNEL_OK")
</pallas_src>

<mosaic_0001>
module attributes {stable_mosaic.version = 11 : i64} {
  func.func @_lse_kernel(%arg0: i32, %arg1: i32, %arg2: memref<8x32xf32, #tpu.memory_space<vmem>>, %arg3: memref<8x1xf32, #tpu.memory_space<vmem>>, %arg4: memref<8x1xf32, #tpu.memory_space<vmem>>, %arg5: memref<8x1xf32, #tpu.memory_space<vmem>>) attributes {dimension_semantics = [#tpu.dimension_semantics<parallel>, #tpu.dimension_semantics<arbitrary>], iteration_bounds = array<i64: 1, 1>, scalar_prefetch = 0 : i64, scratch_operands = 2 : i64, tpu.core_type = #tpu.core_type<tc>, window_params = [{transform_indices = @transform_0, window_bounds = array<i64: 8, 32>}, {transform_indices = @transform_1, window_bounds = array<i64: 8, 1>}]} {
    %c0_i32 = arith.constant 0 : i32
    %0 = arith.cmpi eq, %arg1, %c0_i32 : i32
    %1 = arith.extui %0 : i1 to i32
    %c0_i32_0 = arith.constant 0 : i32
    %2 = arith.cmpi ne, %1, %c0_i32_0 : i32
    scf.if %2 {
      %cst_13 = arith.constant -1.000000e+30 : f32
      %23 = vector.broadcast %cst_13 : f32 to vector<8x1xf32>
      %c0_14 = arith.constant 0 : index
      %c0_15 = arith.constant 0 : index
      %24 = vector.load %arg4[%c0_14, %c0_15] : memref<8x1xf32, #tpu.memory_space<vmem>>, vector<8x1xf32>
      tpu.vector_store %arg4[%c0_14, %c0_15], %23 {strides = array<i32>} : memref<8x1xf32, #tpu.memory_space<vmem>>, vector<8x1xf32>,
      %cst_16 = arith.constant 0.000000e+00 : f32
      %25 = vector.broadcast %cst_16 : f32 to vector<8x1xf32>
      %c0_17 = arith.constant 0 : index
      %c0_18 = arith.constant 0 : index
      %26 = vector.load %arg5[%c0_17, %c0_18] : memref<8x1xf32, #tpu.memory_space<vmem>>, vector<8x1xf32>
      tpu.vector_store %arg5[%c0_17, %c0_18], %25 {strides = array<i32>} : memref<8x1xf32, #tpu.memory_space<vmem>>, vector<8x1xf32>,
    } else {
    }
    %c0 = arith.constant 0 : index
    %c0_1 = arith.constant 0 : index
    %3 = vector.load %arg2[%c0, %c0_1] : memref<8x32xf32, #tpu.memory_space<vmem>>, vector<8x32xf32>
    %cst = arith.constant dense<0xFF800000> : vector<8xf32>
    %4 = vector.multi_reduction <maximumf>, %3, %cst [1] : vector<8x32xf32> to vector<8xf32>
    %5 = vector.shape_cast %4 : vector<8xf32> to vector<8x1xf32>
    %c0_2 = arith.constant 0 : index
    %c0_3 = arith.constant 0 : index
    %6 = vector.load %arg4[%c0_2, %c0_3] : memref<8x1xf32, #tpu.memory_space<vmem>>, vector<8x1xf32>
    %7 = arith.maximumf %6, %5 : vector<8x1xf32>
    %8 = arith.subf %6, %7 : vector<8x1xf32>
    %9 = math.exp %8 : vector<8x1xf32>
    %10 = vector.broadcast %7 : vector<8x1xf32> to vector<8x32xf32>
    %11 = arith.subf %3, %10 : vector<8x32xf32>
    %12 = math.exp %11 : vector<8x32xf32>
    %c0_4 = arith.constant 0 : index
    %c0_5 = arith.constant 0 : index
    %13 = vector.load %arg5[%c0_4, %c0_5] : memref<8x1xf32, #tpu.memory_space<vmem>>, vector<8x1xf32>
    %14 = arith.mulf %9, %13 : vector<8x1xf32>
    %cst_6 = arith.constant dense<0.000000e+00> : vector<8xf32>
    %15 = vector.multi_reduction <add>, %12, %cst_6 [1] : vector<8x32xf32> to vector<8xf32>
    %16 = vector.shape_cast %15 : vector<8xf32> to vector<8x1xf32>
    %17 = arith.addf %14, %16 : vector<8x1xf32>
    %c0_7 = arith.constant 0 : index
    %c0_8 = arith.constant 0 : index
    %18 = vector.load %arg5[%c0_7, %c0_8] : memref<8x1xf32, #tpu.memory_space<vmem>>, vector<8x1xf32>
    tpu.vector_store %arg5[%c0_7, %c0_8], %17 {strides = array<i32>} : memref<8x1xf32, #tpu.memory_space<vmem>>, vector<8x1xf32>,
    %c0_9 = arith.constant 0 : index
    %c0_10 = arith.constant 0 : index
    %19 = vector.load %arg4[%c0_9, %c0_10] : memref<8x1xf32, #tpu.memory_space<vmem>>, vector<8x1xf32>
    tpu.vector_store %arg4[%c0_9, %c0_10], %7 {strides = array<i32>} : memref<8x1xf32, #tpu.memory_space<vmem>>, vector<8x1xf32>,
    %c0_i32_11 = arith.constant 0 : i32
    %20 = arith.cmpi eq, %arg1, %c0_i32_11 : i32
    %21 = arith.extui %20 : i1 to i32
    %c0_i32_12 = arith.constant 0 : i32
    %22 = arith.cmpi ne, %21, %c0_i32_12 : i32
    scf.if %22 {
      %c0_13 = arith.constant 0 : index
      %c0_14 = arith.constant 0 : index
      %23 = vector.load %arg4[%c0_13, %c0_14] : memref<8x1xf32, #tpu.memory_space<vmem>>, vector<8x1xf32>
      %c0_15 = arith.constant 0 : index
      %c0_16 = arith.constant 0 : index
      %24 = vector.load %arg5[%c0_15, %c0_16] : memref<8x1xf32, #tpu.memory_space<vmem>>, vector<8x1xf32>
      %25 = math.log %24 : vector<8x1xf32>
      %26 = arith.addf %23, %25 : vector<8x1xf32>
      %c0_17 = arith.constant 0 : index
      %c0_18 = arith.constant 0 : index
      %27 = vector.load %arg3[%c0_17, %c0_18] : memref<8x1xf32, #tpu.memory_space<vmem>>, vector<8x1xf32>
      tpu.vector_store %arg3[%c0_17, %c0_18], %26 {strides = array<i32>} : memref<8x1xf32, #tpu.memory_space<vmem>>, vector<8x1xf32>,
    } else {
    }
    return
  }
  func.func @transform_0(%arg0: i32, %arg1: i32) -> (i32, i32) {
    %c0_i32 = arith.constant 0 : i32
    return %arg0, %arg1 : i32, i32
  }
  func.func @transform_1(%arg0: i32, %arg1: i32) -> (i32, i32) {
    %c0_i32 = arith.constant 0 : i32
    %c0_i32_0 = arith.constant 0 : i32
    return %arg0, %c0_i32 : i32, i32
  }
}

</mosaic_0001>

<llo_original>
// kernel: tpu_custom_call.1
$region0: #{tpu_custom_call.1}
  #allocation0 [shape = 'u32[]', space=smem, size = 0x4, offset = 0x4, fixed_abs, tag = 'smem constant byte address 0x4 - core index']
  #allocation1 [shape = 'u32[144,128]{1,0:T(1,128)}', space=vmem, size = 0x12000, scoped, tag = 'internal scratch']
  #allocation2 [shape = 'f32[8,1]{1,0:T(8,128)}', space=vmem, size = 0x1000, scoped, tag = 'scratch operand']
  #allocation3 [shape = 'f32[8,1]{1,0:T(8,128)}', space=vmem, size = 0x1000, scoped, tag = 'scratch operand']
  %s0 = inlined_call_operand.hbm [shape: f32[8,32], index: 0, kind: input, shape index: {}]
  %s1 = inlined_call_operand.vmem [shape: f32[8,1], index: 1, kind: output, shape index: {}]
  %s2 = sld [smem:[#allocation0]]
  $region26: #{tpu_custom_call.1} parent=0
    _
  %s4 = ssub.s32 1, %s2
  %s5 = scalar_select 0, %s4, %s2
  $region1: #{tpu_custom_call.1} parent=0
    #allocation4 [shape = 'u8[4096]{0}', space=vmem, size = 0x1000, scoped, tag = 'input window, operand 0, single buffered']
    #allocation5 [shape = 's32[1]{0}', space=sflag, size = 0x4, scoped, tag = 'scoped memory for tpu_custom_call.1']
    %6 = vsyncpa [#allocation5], 0
    // Predicated region
    $region2: #{tpu_custom_call.1} parent=1 // pred_check
      _
    $region3: #{tpu_custom_call.1} parent=1 // pred_check_branch
      %8 = sbr.rel (0) target = $region5
    $region4: #{tpu_custom_call.1} parent=1 // pred_region
      %s10 = ssub.s32 128, 128
      %11 = vsyncadd [#allocation5], %s10
      %s13 = sshll.u32 [#allocation4], 4
      %s14 = int_to_ptr.vmem [resolvable:$true] %s13
      %16 = dma.hbm_to_vmem [thread:$0]  %s0, 128, %s14, [#allocation5]
    $region5: #{tpu_custom_call.1} parent=1 // pred_fallthru
      _
    // Predicated region
    $region6: #{tpu_custom_call.1} parent=1 // pred_check
      _
    $region7: #{tpu_custom_call.1} parent=1 // pred_check_branch
      %18 = sbr.rel (0) target = $region9
    $region8: #{tpu_custom_call.1} parent=1 // pred_region
      %19 = dma.done [#allocation5], 128
    $region9: #{tpu_custom_call.1} parent=1 // pred_fallthru
      _
    %p20 = scmp.eq.s32.totalorder 0, 0
    // Predicated region
    $region10: #{tpu_custom_call.1} parent=1 // pred_check
      %p21 = pneg %p20
    $region11: #{tpu_custom_call.1} parent=1 // pred_check_branch
      %23 = sbr.rel (%p21) target = $region13
    $region12: #{tpu_custom_call.1} parent=1 // pred_region
      %vm24 = vcmask 7168
      %25 = vst.msk [vmem:[#allocation2] sm:$0xff] %vm24, -1e+30
      %26 = vst.msk [vmem:[#allocation3] sm:$0xff] %vm24, 0.0
    $region13: #{tpu_custom_call.1} parent=1 // pred_fallthru
      _
    %v27 = vld [vmem:[#allocation4] sm:$0xff]
    %vm28 = vcmask 261120
    %v29 = vsel %vm28, %v27, -inf
    %30 = vmax.xlane.f32.xlu0 %v29
    %v31 = vpop.xlane.xlu0 %30
    %v32 = vld [vmem:[#allocation2] sm:$0xff]
    %v33 = vmax.f32 %v32, %v31
    %v34 = vsub.f32 %v32, %v33
    %v35 = vmul.f32 %v34, 1.442695
    %v36 = vpow.pop %v35
    %38 = vset.pattern.permute.xlu0 0
    %39 = vperm.xlu0 %38, %v33
    %v40 = vpop.permute.xlu0 %39
    %v42 = vsub.f32 %v27, %v40
    %v43 = vmul.f32 %v42, 1.442695
    %v44 = vpow.pop %v43
    %v45 = vld [vmem:[#allocation3] sm:$0xff]
    %v46 = vmul.f32 %v36, %v45
    %v47 = vsel %vm28, %v44, 0.0
    %48 = vadd.xlane.f32.xlu0 %v47
    %v49 = vpop.xlane.xlu0 %48
    %v50 = vadd.f32 %v46, %v49
    %vm51 = vcmask 7168
    %52 = vst.msk [vmem:[#allocation3] sm:$0xff] %vm51, %v50
    %53 = vst.msk [vmem:[#allocation2] sm:$0xff] %vm51, %v33
    // Predicated region
    $region14: #{tpu_custom_call.1} parent=1 // pred_check
      %p54 = pneg %p20
    $region15: #{tpu_custom_call.1} parent=1 // pred_check_branch
      %56 = sbr.rel (%p54) target = $region17
    $region16: #{tpu_custom_call.1} parent=1 // pred_region
      %v57 = vld [vmem:[#allocation2] sm:$0xff]
      %v58 = vld [vmem:[#allocation3] sm:$0xff]
      %v59 = vlog2.pop %v58
      %v60 = vmul.f32 %v59, 0.6931472
      %v61 = vadd.f32 %v57, %v60
      %62 = vst.msk [vmem:[%s1] sm:$0xff] %vm51, %v61
    $region17: #{tpu_custom_call.1} parent=1 // pred_fallthru
      _
    // Predicated region
    $region18: #{tpu_custom_call.1} parent=1 // pred_check
      _
    $region19: #{tpu_custom_call.1} parent=1 // pred_check_branch
      %64 = sbr.rel (0) target = $region21
    $region20: #{tpu_custom_call.1} parent=1 // pred_region
      _
    $region21: #{tpu_custom_call.1} parent=1 // pred_fallthru
      _
    // Predicated region
    $region22: #{tpu_custom_call.1} parent=1 // pred_check
      _
    $region23: #{tpu_custom_call.1} parent=1 // pred_check_branch
      %66 = sbr.rel (0) target = $region25
    $region24: #{tpu_custom_call.1} parent=1 // pred_region
      _
    $region25: #{tpu_custom_call.1} parent=1 // pred_fallthru
      _
    %67 = vsyncpa [#allocation5], 1

</llo_original>
